<compile_context>
chip_gen: v7x
topology: tpu7x:2x2x1
jax: 0.10.0
libtpu: 0.0.40
codegen_flags: <defaults>
</compile_context>

<pallas_src>
import functools

import jax
import jax.numpy as jnp
from jax import lax
from jax.experimental import pallas as pl
from jax.experimental.pallas import tpu as pltpu

LANES = 128
ACC_SUBLANES = 8                       # one f32 vreg = (8, 128)
TILE_BYTES_PER_INPUT = 4 * 1024 * 1024  # ~4 MiB per input per grid step
                                        # (2 inputs x 2 pipeline buffers = 16 MiB;
                                        #  vmem_limit_bytes is raised explicitly
                                        #  so this is safe on v5e/v6e/v7x)
MIN_STEPS_PER_SPLIT = 2                 # keep both TCs' pipelines overlapped


def _floor_align(x, a):
    return (x // a) * a


def _wmse_kernel(out_ref, tgt_ref, partial_ref, acc_ref, *,
                 high_threshold, low_threshold,
                 high_weight, low_weight, very_low_weight,
                 valid_rows, tile_rows, steps_per_split, needs_mask):
    j = pl.program_id(1)

    @pl.when(j == 0)
    def _():
        acc_ref[...] = jnp.zeros_like(acc_ref)

    o = out_ref[...].astype(jnp.float32)
    t = tgt_ref[...].astype(jnp.float32)
    d = o - t
    sq = d * d
    w = jnp.where(
        t > high_threshold,
        jnp.float32(high_weight),
        jnp.where(t < low_threshold,
                  jnp.float32(very_low_weight),
                  jnp.float32(low_weight)))
    contrib = w * sq

    def _fold(x):
        # (tile_rows, 128) -> (8, 128): sublane regroup + plain vreg adds
        # (VPU only; no per-step cross-lane reduce, no scalar round trip).
        return x.reshape(tile_rows // ACC_SUBLANES, ACC_SUBLANES, LANES).sum(axis=0)

    if needs_mask:
        # Row-granular masking only.  Zero-padded tail lanes already contribute
        # 0 (diff == 0), so only (a) OOB rows of the partial last Pallas block
        # and (b) whole duplicated/clamped blocks need zeroing — both are row /
        # block granular.  `b` is the LOGICAL (unclamped) block index, so a
        # duplicated block (b >= num_blocks) has row0 >= valid_rows and is
        # zeroed entirely.  Compares row counts (not element indices), so no
        # int32 overflow until ~2^31 rows (~2.7e11 elements).
        b = pl.program_id(0) * steps_per_split + j
        row0 = b * tile_rows
        boundary = row0 + tile_rows > valid_rows

        @pl.when(boundary)          # only the boundary/duplicate blocks pay the mask
        def _():
            row_ids = lax.broadcasted_iota(jnp.int32, (tile_rows, LANES), 0) + row0
            acc_ref[...] += _fold(
                jnp.where(row_ids < valid_rows, contrib, jnp.float32(0.0)))

        @pl.when(jnp.logical_not(boundary))
        def _():
            acc_ref[...] += _fold(contrib)
    else:
        acc_ref[...] += _fold(contrib)

    @pl.when(j == steps_per_split - 1)
    def _():
        partial_ref[...] = acc_ref[...].reshape(1, ACC_SUBLANES, LANES)


def weighted_mse_loss(outputs, targets,
                      high_threshold=14.5, low_threshold=4.0,
                      high_weight=6.0, low_weight=1.0, very_low_weight=3.0):
    assert outputs.shape == targets.shape
    n_elems = int(outputs.size)
    itemsize = jnp.dtype(outputs.dtype).itemsize
    # Sublane packing: f32 -> 8 rows, bf16 -> 16, int8/fp8 -> 32.
    row_align = max(ACC_SUBLANES, (4 // max(itemsize, 1)) * ACC_SUBLANES)

    # Flatten in native dtype (no forced f32 cast: the kernel upcasts in VMEM,
    # so bf16 inputs move half the HBM bytes).
    o_flat = outputs.reshape(-1)
    t_flat = targets.reshape(-1)

    rows = pl.cdiv(n_elems, LANES)
    rows = max(rows, row_align)             # need at least one aligned sublane group
    padded_len = rows * LANES
    if padded_len != n_elems:
        # Only needed when n_elems isn't lane-aligned (or is tiny).  Padded
        # positions are 0 in both inputs -> contribute 0 to the sum.
        o_flat = jnp.pad(o_flat, (0, padded_len - n_elems))
        t_flat = jnp.pad(t_flat, (0, padded_len - n_elems))
    o2 = o_flat.reshape(rows, LANES)
    t2 = t_flat.reshape(rows, LANES)

    # Dtype-aware target tile rows from a byte budget (keeps per-step DMA
    # volume, and thus per-step overhead amortization, constant across dtypes).
    target_rows = _floor_align(TILE_BYTES_PER_INPUT // (LANES * itemsize), row_align)
    target_rows = max(target_rows, row_align)

    # Choose the split BEFORE the tile size: a leading size-2 "parallel" axis
    # gives one slice per TensorCore on v7x; on v5e/v6e (1 TC) it is just a
    # serial outer loop with its own partial sum.
    nsplit = 2 if rows >= 2 * row_align else 1

    # Cap tile_rows so each split gets at least MIN_STEPS_PER_SPLIT pipelined
    # steps when the input is big enough (keeps both TC DMA engines busy and
    # gives double-buffering something to overlap).
    cap = _floor_align(rows // (nsplit * MIN_STEPS_PER_SPLIT), row_align)
    if cap < row_align:
        cap = _floor_align(rows // nsplit, row_align)   # >=1 block per split
    if cap < row_align:
        cap = row_align
    tile_rows = min(target_rows, cap)

    num_blocks = pl.cdiv(rows, tile_rows)
    steps = pl.cdiv(num_blocks, nsplit)
    needs_mask = (rows % tile_rows != 0) or (nsplit * steps != num_blocks)

    def in_index_map(s, j):
        # Clamp so "extra" grid steps (when num_blocks isn't divisible by
        # nsplit) re-read a valid block; their contribution is masked to 0.
        b = jnp.minimum(s * steps + j, num_blocks - 1)
        return (b, 0)

    def out_index_map(s, j):
        return (s, 0, 0)

    kernel = functools.partial(
        _wmse_kernel,
        high_threshold=float(high_threshold),
        low_threshold=float(low_threshold),
        high_weight=float(high_weight),
        low_weight=float(low_weight),
        very_low_weight=float(very_low_weight),
        valid_rows=rows,
        tile_rows=tile_rows,
        steps_per_split=steps,
        needs_mask=needs_mask,
    )

    cost = pl.CostEstimate(
        flops=8 * n_elems,
        transcendentals=0,
        bytes_accessed=2 * n_elems * itemsize
        + nsplit * ACC_SUBLANES * LANES * 4,
    )

    # 2 inputs x 2 pipeline buffers of tile_rows x 128, plus output block and
    # (8,128) scratch; raise the scoped-VMEM limit explicitly so the large tile
    # is legal on v5e's 16 MiB default as well (physical VMEM: 128/128/64 MiB).
    tile_bytes = tile_rows * LANES * itemsize
    vmem_limit = int(max(32 << 20, 4 * tile_bytes + (4 << 20)))

    partials = pl.pallas_call(
        kernel,
        out_shape=jax.ShapeDtypeStruct((nsplit, ACC_SUBLANES, LANES),
                                       jnp.float32),
        grid_spec=pltpu.PrefetchScalarGridSpec(
            num_scalar_prefetch=0,
            grid=(nsplit, steps),
            in_specs=[
                pl.BlockSpec((tile_rows, LANES), in_index_map),
                pl.BlockSpec((tile_rows, LANES), in_index_map),
            ],
            out_specs=pl.BlockSpec((1, ACC_SUBLANES, LANES), out_index_map),
            scratch_shapes=[pltpu.VMEM((ACC_SUBLANES, LANES), jnp.float32)],
        ),
        compiler_params=pltpu.CompilerParams(
            dimension_semantics=("parallel", "arbitrary"),
            vmem_limit_bytes=vmem_limit),
        cost_estimate=cost,
    )(o2, t2)

    # Tiny epilogue reduction in the wrapper; mean over the ORIGINAL count.
    # Note: plain f32 per-lane accumulation; for n >= ~1e9 elements drift may
    # exceed ~1e-5 rtol vs an f32 reference (acceptable for a loss value).
    return jnp.sum(partials) / jnp.float32(n_elems)


def weighted_mse_loss_ref(outputs, targets,
                          high_threshold=14.5, low_threshold=4.0,
                          high_weight=6.0, low_weight=1.0, very_low_weight=3.0):
    sq = (outputs - targets) ** 2
    w = jnp.where(targets > high_threshold, high_weight,
                  jnp.where(targets < low_threshold, very_low_weight,
                            low_weight))
    return jnp.mean(w * sq)


if __name__ == "__main__":
    key = jax.random.PRNGKey(0)
    k1, k2, k3, k4, k5, k6 = jax.random.split(key, 6)

    # Small NCHW predictions/targets; value range exercises all three weight
    # branches (>14.5, <4, in-between).  rows=16 -> 2-way split, no masking.
    outputs = jax.random.uniform(k1, (2, 4, 16, 16), jnp.float32, 0.0, 20.0)
    targets = jax.random.uniform(k2, (2, 4, 16, 16), jnp.float32, 0.0, 20.0)
    loss = weighted_mse_loss(outputs, targets)
    jax.block_until_ready(loss)
    ref = weighted_mse_loss_ref(outputs, targets)
    assert jnp.allclose(loss, ref, rtol=1e-5, atol=1e-5), (loss, ref)

    # Non-lane-aligned odd shape -> partial-last-block row mask, single split.
    outputs2 = jax.random.uniform(k3, (3, 5, 7, 11), jnp.float32, 0.0, 20.0)
    targets2 = jax.random.uniform(k4, (3, 5, 7, 11), jnp.float32, 0.0, 20.0)
    loss2 = weighted_mse_loss(outputs2, targets2)
    jax.block_until_ready(loss2)
    ref2 = weighted_mse_loss_ref(outputs2, targets2)
    assert jnp.allclose(loss2, ref2, rtol=1e-5, atol=1e-5), (loss2, ref2)

    # Mid-size non-aligned shape -> 2-way split with a duplicated (fully
    # masked) block AND a partial last block; exercises both pl.when mask paths.
    outputs3 = jax.random.uniform(k5, (2, 4, 32, 33), jnp.float32, 0.0, 20.0)
    targets3 = jax.random.uniform(k6, (2, 4, 32, 33), jnp.float32, 0.0, 20.0)
    loss3 = weighted_mse_loss(outputs3, targets3)
    jax.block_until_ready(loss3)
    ref3 = weighted_mse_loss_ref(outputs3, targets3)
    assert jnp.allclose(loss3, ref3, rtol=1e-5, atol=1e-5), (loss3, ref3)

    print("KERNEL_OK")
</pallas_src>

<mosaic_0001>
module attributes {stable_mosaic.version = 11 : i64} {
  func.func @_wmse_kernel(%arg0: i32, %arg1: i32, %arg2: memref<8x128xf32, #tpu.memory_space<vmem>>, %arg3: memref<8x128xf32, #tpu.memory_space<vmem>>, %arg4: memref<1x8x128xf32, #tpu.memory_space<vmem>>, %arg5: memref<8x128xf32, #tpu.memory_space<vmem>>) attributes {dimension_semantics = [#tpu.dimension_semantics<parallel>, #tpu.dimension_semantics<arbitrary>], iteration_bounds = array<i64: 2, 1>, scalar_prefetch = 0 : i64, scratch_operands = 1 : i64, tpu.core_type = #tpu.core_type<tc>, window_params = [{transform_indices = @transform_0, window_bounds = array<i64: 8, 128>}, {transform_indices = @transform_1, window_bounds = array<i64: 8, 128>}, {transform_indices = @transform_2, window_bounds = array<i64: 1, 8, 128>}]} {
    %c0_i32 = arith.constant 0 : i32
    %0 = arith.cmpi eq, %arg1, %c0_i32 : i32
    %1 = arith.extui %0 : i1 to i32
    %c0_i32_0 = arith.constant 0 : i32
    %2 = arith.cmpi ne, %1, %c0_i32_0 : i32
    scf.if %2 {
      %cst_15 = arith.constant 0.000000e+00 : f32
      %25 = vector.broadcast %cst_15 : f32 to vector<8x128xf32>
      %c0_16 = arith.constant 0 : index
      %c0_17 = arith.constant 0 : index
      %26 = vector.load %arg5[%c0_16, %c0_17] : memref<8x128xf32, #tpu.memory_space<vmem>>, vector<8x128xf32>
      tpu.vector_store %arg5[%c0_16, %c0_17], %25 {strides = array<i32>} : memref<8x128xf32, #tpu.memory_space<vmem>>, vector<8x128xf32>,
    } else {
    }
    %c0 = arith.constant 0 : index
    %c0_1 = arith.constant 0 : index
    %3 = vector.load %arg2[%c0, %c0_1] : memref<8x128xf32, #tpu.memory_space<vmem>>, vector<8x128xf32>
    %c0_2 = arith.constant 0 : index
    %c0_3 = arith.constant 0 : index
    %4 = vector.load %arg3[%c0_2, %c0_3] : memref<8x128xf32, #tpu.memory_space<vmem>>, vector<8x128xf32>
    %5 = arith.subf %3, %4 : vector<8x128xf32>
    %6 = arith.mulf %5, %5 : vector<8x128xf32>
    %cst = arith.constant 1.450000e+01 : f32
    %7 = vector.broadcast %cst : f32 to vector<8x128xf32>
    %8 = arith.cmpf ogt, %4, %7 : vector<8x128xf32>
    %cst_4 = arith.constant 4.000000e+00 : f32
    %9 = vector.broadcast %cst_4 : f32 to vector<8x128xf32>
    %10 = arith.cmpf olt, %4, %9 : vector<8x128xf32>
    %cst_5 = arith.constant 3.000000e+00 : f32
    %cst_6 = arith.constant 1.000000e+00 : f32
    %11 = vector.broadcast %cst_5 : f32 to vector<8x128xf32>
    %12 = vector.broadcast %cst_6 : f32 to vector<8x128xf32>
    %13 = arith.select %10, %11, %12 : vector<8x128xi1>, vector<8x128xf32>
    %cst_7 = arith.constant 6.000000e+00 : f32
    %14 = vector.broadcast %cst_7 : f32 to vector<8x128xf32>
    %15 = arith.select %8, %14, %13 : vector<8x128xi1>, vector<8x128xf32>
    %16 = arith.mulf %15, %6 : vector<8x128xf32>
    %c0_8 = arith.constant 0 : index
    %c0_9 = arith.constant 0 : index
    %17 = vector.load %arg5[%c0_8, %c0_9] : memref<8x128xf32, #tpu.memory_space<vmem>>, vector<8x128xf32>
    %18 = vector.shape_cast %16 : vector<8x128xf32> to vector<1x8x128xf32>
    %cst_10 = arith.constant dense<0.000000e+00> : vector<8x128xf32>
    %19 = vector.multi_reduction <add>, %18, %cst_10 [0] : vector<1x8x128xf32> to vector<8x128xf32>
    %20 = arith.addf %17, %19 : vector<8x128xf32>
    %c0_11 = arith.constant 0 : index
    %c0_12 = arith.constant 0 : index
    %21 = vector.load %arg5[%c0_11, %c0_12] : memref<8x128xf32, #tpu.memory_space<vmem>>, vector<8x128xf32>
    tpu.vector_store %arg5[%c0_11, %c0_12], %20 {strides = array<i32>} : memref<8x128xf32, #tpu.memory_space<vmem>>, vector<8x128xf32>,
    %c0_i32_13 = arith.constant 0 : i32
    %22 = arith.cmpi eq, %arg1, %c0_i32_13 : i32
    %23 = arith.extui %22 : i1 to i32
    %c0_i32_14 = arith.constant 0 : i32
    %24 = arith.cmpi ne, %23, %c0_i32_14 : i32
    scf.if %24 {
      %c0_15 = arith.constant 0 : index
      %c0_16 = arith.constant 0 : index
      %25 = vector.load %arg5[%c0_15, %c0_16] : memref<8x128xf32, #tpu.memory_space<vmem>>, vector<8x128xf32>
      %26 = vector.shape_cast %25 : vector<8x128xf32> to vector<1x8x128xf32>
      %c0_17 = arith.constant 0 : index
      %c0_18 = arith.constant 0 : index
      %c0_19 = arith.constant 0 : index
      %27 = vector.load %arg4[%c0_17, %c0_18, %c0_19] : memref<1x8x128xf32, #tpu.memory_space<vmem>>, vector<1x8x128xf32>
      tpu.vector_store %arg4[%c0_17, %c0_18, %c0_19], %26 {strides = array<i32>} : memref<1x8x128xf32, #tpu.memory_space<vmem>>, vector<1x8x128xf32>,
    } else {
    }
    return
  }
  func.func @transform_0(%arg0: i32, %arg1: i32) -> (i32, i32) {
    %c1_i32 = arith.constant 1 : i32
    %0 = arith.muli %arg0, %c1_i32 : i32
    %1 = arith.addi %0, %arg1 : i32
    %c1_i32_0 = arith.constant 1 : i32
    %2 = arith.minsi %1, %c1_i32_0 : i32
    %c0_i32 = arith.constant 0 : i32
    %c0_i32_1 = arith.constant 0 : i32
    return %2, %c0_i32 : i32, i32
  }
  func.func @transform_1(%arg0: i32, %arg1: i32) -> (i32, i32) {
    %c1_i32 = arith.constant 1 : i32
    %0 = arith.muli %arg0, %c1_i32 : i32
    %1 = arith.addi %0, %arg1 : i32
    %c1_i32_0 = arith.constant 1 : i32
    %2 = arith.minsi %1, %c1_i32_0 : i32
    %c0_i32 = arith.constant 0 : i32
    %c0_i32_1 = arith.constant 0 : i32
    return %2, %c0_i32 : i32, i32
  }
  func.func @transform_2(%arg0: i32, %arg1: i32) -> (i32, i32, i32) {
    %c0_i32 = arith.constant 0 : i32
    %c0_i32_0 = arith.constant 0 : i32
    %c0_i32_1 = arith.constant 0 : i32
    return %arg0, %c0_i32, %c0_i32_0 : i32, i32, i32
  }
}

</mosaic_0001>

<llo_original>
// kernel: tpu_custom_call.1
$region0: #{tpu_custom_call.1}
  #allocation0 [shape = 'u32[]', space=smem, size = 0x4, offset = 0x4, fixed_abs, tag = 'smem constant byte address 0x4 - core index']
  #allocation1 [shape = 'u32[144,128]{1,0:T(1,128)}', space=vmem, size = 0x12000, scoped, tag = 'internal scratch']
  #allocation2 [shape = 'f32[8,128]{1,0:T(8,128)}', space=vmem, size = 0x1000, scoped, tag = 'scratch operand']
  %s0 = inlined_call_operand.hbm [shape: f32[16,128], index: 0, kind: input, shape index: {}]
  %s1 = inlined_call_operand.hbm [shape: f32[16,128], index: 1, kind: input, shape index: {}]
  %s2 = inlined_call_operand.hbm [shape: f32[2,8,128], index: 2, kind: output, shape index: {}]
  %s3 = sld [smem:[#allocation0]]
  $region57: #{tpu_custom_call.1} parent=0
    _
  %s5 = ssub.s32 1, %s3
  %s6 = scalar_select 0, %s5, %s3
  $region1: #{tpu_custom_call.1} parent=0
    #allocation3 [shape = 'u8[8192]{0}', space=vmem, size = 0x2000, scoped, tag = 'input window, operand 0']
    #allocation4 [shape = 's32[2]{0}', space=sflag, size = 0x8, scoped, tag = 'scoped memory for tpu_custom_call.1']
    #allocation5 [shape = 's32[2]{0}', space=sflag, size = 0x8, scoped, tag = 'scoped memory for tpu_custom_call.1']
    #allocation6 [shape = 'u8[8192]{0}', space=vmem, size = 0x2000, scoped, tag = 'input window, operand 1']
    #allocation7 [shape = 's32[2]{0}', space=sflag, size = 0x8, scoped, tag = 'scoped memory for tpu_custom_call.1']
    #allocation8 [shape = 'u8[8192]{0}', space=vmem, size = 0x2000, scoped, tag = 'output window, operand 0']
    %7 = vsyncpa [#allocation4], 0
    %s8 = scalar_lea.sflag [#allocation4], 1
    %9 = vsyncpa %s8, 0
    %10 = vsyncpa [#allocation7], 0
    %s11 = scalar_lea.sflag [#allocation7], 1
    %12 = vsyncpa %s11, 0
    %13 = vsyncpa [#allocation5], 0
    %s14 = scalar_lea.sflag [#allocation5], 1
    %15 = vsyncpa %s14, 0
    loop: start=0, step=1, limit=4
    $region2: #{tpu_custom_call.1} parent=1 // loop_pre_header
      _
    $region3: #{tpu_custom_call.1} parent=1 // loop_header
      %s17 = sphi 0, %s21
      %p18 = scmp.ge.s32.totalorder %s17, 4
      %s24 = sphi 0, %s36
      %s25 = sphi 0, %s32
      %s26 = sphi 0, %s24
      %s27 = sphi 0, %s25
      %s28 = sphi 0, %s26
      %s29 = sphi 0, %s27
      %s45 = sphi 0, %s47
      %s48 = sphi 0, %s45
      %s49 = sphi 0, %s48
      %s65 = sphi 0, %s49
      %s77 = sphi 0, %s79
      %s80 = sphi 0, %s77
      %s81 = sphi 0, %s80
      %s97 = sphi 0, %s81
      %s103 = sphi 0, %s105
      %s106 = sphi 0, %s103
      %s107 = sphi 0, %s106
      %s123 = sphi 0, %s107
    $region4: #{tpu_custom_call.1} parent=1 // loop_header_branch
      %20 = sbr.rel (%p18) target = $region8
    $region5: #{tpu_custom_call.1} parent=1 // loop_body
      %s22 = ssub.s32 %s17, 1
      %s23 = ssub.s32 %s17, 2
      %s30 = sadd.s32 1, %s25
      %p31 = scmp.ge.s32.totalorder %s30, 1
      %s32 = scalar_select %p31, 0, %s30
      %s33 = sadd.s32 1, %s24
      %s34 = scalar_select %p31, %s33, %s24
      %p35 = scmp.ge.s32.totalorder %s34, 2
      %s36 = scalar_select %p35, 0, %s34
      %s37 = sadd.s32 %s24, %s25
      %p38 = scmp.lt.s32.totalorder %s37, 1
      %s39 = scalar_select %p38, %s37, 1
      %s40 = sadd.s32 %s36, %s32
      %p41 = scmp.lt.s32.totalorder %s40, 1
      %s42 = scalar_select %p41, %s40, 1
      %s43 = ssub.s32 %s39, %s42
      %p44 = scmp.eq.s32.totalorder %s43, 0
      %s46 = sadd.s32 %s45, 1
      %s47 = scalar_select %p44, %s45, %s46
      %p50 = pneg %p44
      %p51 = scmp.eq.s32.totalorder %s17, 1
      %p52 = por %p50, %p51
      %p53 = scmp.ne.s32.totalorder %s45, %s48
      %p54 = scmp.eq.s32.totalorder %s17, 0
      %p55 = por %p53, %p54
      %p56 = scmp.ne.s32.totalorder %s45, %s48
      %p57 = scmp.eq.s32.totalorder %s22, 1
      %p58 = por %p56, %p57
      %p59 = scmp.ne.s32.totalorder %s48, %s49
      %p60 = scmp.eq.s32.totalorder %s22, 0
      %p61 = por %p59, %p60
      %p62 = scmp.ne.s32.totalorder %s48, %s49
      %p63 = scmp.eq.s32.totalorder %s23, 1
      %p64 = por %p62, %p63
      %p66 = scmp.ne.s32.totalorder %s49, %s65
      %p67 = scmp.eq.s32.totalorder %s23, 0
      %p68 = por %p66, %p67
      %s69 = sadd.s32 %s24, %s25
      %p70 = scmp.lt.s32.totalorder %s69, 1
      %s71 = scalar_select %p70, %s69, 1
      %s72 = sadd.s32 %s36, %s32
      %p73 = scmp.lt.s32.totalorder %s72, 1
      %s74 = scalar_select %p73, %s72, 1
      %s75 = ssub.s32 %s71, %s74
      %p76 = scmp.eq.s32.totalorder %s75, 0
      %s78 = sadd.s32 %s77, 1
      %s79 = scalar_select %p76, %s77, %s78
      %p82 = pneg %p76
      %p83 = scmp.eq.s32.totalorder %s17, 1
      %p84 = por %p82, %p83
      %p85 = scmp.ne.s32.totalorder %s77, %s80
      %p86 = scmp.eq.s32.totalorder %s17, 0
      %p87 = por %p85, %p86
      %p88 = scmp.ne.s32.totalorder %s77, %s80
      %p89 = scmp.eq.s32.totalorder %s22, 1
      %p90 = por %p88, %p89
      %p91 = scmp.ne.s32.totalorder %s80, %s81
      %p92 = scmp.eq.s32.totalorder %s22, 0
      %p93 = por %p91, %p92
      %p94 = scmp.ne.s32.totalorder %s80, %s81
      %p95 = scmp.eq.s32.totalorder %s23, 1
      %p96 = por %p94, %p95
      %p98 = scmp.ne.s32.totalorder %s81, %s97
      %p99 = scmp.eq.s32.totalorder %s23, 0
      %p100 = por %p98, %p99
      %s101 = ssub.s32 %s24, %s36
      %p102 = scmp.eq.s32.totalorder %s101, 0
      %s104 = sadd.s32 %s103, 1
      %s105 = scalar_select %p102, %s103, %s104
      %p108 = pneg %p102
      %p109 = scmp.eq.s32.totalorder %s17, 1
      %p110 = por %p108, %p109
      %p111 = scmp.ne.s32.totalorder %s103, %s106
      %p112 = scmp.eq.s32.totalorder %s17, 0
      %p113 = por %p111, %p112
      %p114 = scmp.ne.s32.totalorder %s103, %s106
      %p115 = scmp.eq.s32.totalorder %s22, 1
      %p116 = por %p114, %p115
      %p117 = scmp.ne.s32.totalorder %s106, %s107
      %p118 = scmp.eq.s32.totalorder %s22, 0
      %p119 = por %p117, %p118
      %p120 = scmp.ne.s32.totalorder %s106, %s107
      %p121 = scmp.eq.s32.totalorder %s23, 1
      %p122 = por %p120, %p121
      %p124 = scmp.ne.s32.totalorder %s107, %s123
      %p125 = scmp.eq.s32.totalorder %s23, 0
      %p126 = por %p124, %p125
      %p127 = scmp.le.s32.totalorder 1, %s17
      %p128 = scmp.lt.s32.totalorder %s17, 3
      %p129 = pnand %p127, %p128
      %p130 = pneg %p129
      // Predicated region
      $region9: #{tpu_custom_call.1} parent=5 // pred_check
        _
      $region10: #{tpu_custom_call.1} parent=5 // pred_check_branch
        %132 = sbr.rel (%p129) target = $region12
      $region11: #{tpu_custom_call.1} parent=5 // pred_region
        %s133 = ssub.s32 %s17, 1
      $region12: #{tpu_custom_call.1} parent=5 // pred_fallthru
        _
      %p134 = scmp.lt.s32.totalorder %s17, 2
      // Predicated region
      $region13: #{tpu_custom_call.1} parent=5 // pred_check
        %p135 = pneg %p134
      $region14: #{tpu_custom_call.1} parent=5 // pred_check_branch
        %137 = sbr.rel (%p135) target = $region16
      $region15: #{tpu_custom_call.1} parent=5 // pred_region
        // Predicated region
        $region17: #{tpu_custom_call.1} parent=15 // pred_check
          %p138 = pneg %p55
        $region18: #{tpu_custom_call.1} parent=15 // pred_check_branch
          %140 = sbr.rel (%p138) target = $region20
        $region19: #{tpu_custom_call.1} parent=15 // pred_region
          %s141 = sand.u32 %s45, 1
          %s142 = scalar_lea.sflag [#allocation4], %s141
          %s143 = sand.u32 %s45, 1
          %s144 = smul.addr %s143, 8
          %s145 = scalar_lea.vmem [#allocation3], %s144
          %s146 = sadd.s32 %s24, %s25
          %p147 = scmp.lt.s32.totalorder %s146, 1
          %s148 = scalar_select %p147, %s146, 1
          %s150 = ssub.s32 128, 128
          %151 = vsyncadd %s142, %s150
          %s152 = smul.addr %s148, 128
          %s153 = scalar_lea.hbm %s0, %s152
          %s155 = sshll.u32 %s145, 4
          %s156 = int_to_ptr.vmem [resolvable:$true] %s155
          %158 = dma.hbm_to_vmem [thread:$0]  %s153, 128, %s156, %s142
        $region20: #{tpu_custom_call.1} parent=15 // pred_fallthru
          _
        // Predicated region
        $region21: #{tpu_custom_call.1} parent=15 // pred_check
          %p159 = pneg %p87
        $region22: #{tpu_custom_call.1} parent=15 // pred_check_branch
          %161 = sbr.rel (%p159) target = $region24
        $region23: #{tpu_custom_call.1} parent=15 // pred_region
          %s162 = sand.u32 %s77, 1
          %s163 = scalar_lea.sflag [#allocation7], %s162
          %s164 = sand.u32 %s77, 1
          %s165 = smul.addr %s164, 8
          %s166 = scalar_lea.vmem [#allocation6], %s165
          %s167 = sadd.s32 %s24, %s25
          %p168 = scmp.lt.s32.totalorder %s167, 1
          %s169 = scalar_select %p168, %s167, 1
          %s171 = ssub.s32 128, 128
          %172 = vsyncadd %s163, %s171
          %s173 = smul.addr %s169, 128
          %s174 = scalar_lea.hbm %s1, %s173
          %s176 = sshll.u32 %s166, 4
          %s177 = int_to_ptr.vmem [resolvable:$true] %s176
          %179 = dma.hbm_to_vmem [thread:$0]  %s174, 128, %s177, %s163
        $region24: #{tpu_custom_call.1} parent=15 // pred_fallthru
          _
      $region16: #{tpu_custom_call.1} parent=5 // pred_fallthru
        _
      %p180 = scmp.le.s32.totalorder 1, %s17
      %p181 = scmp.lt.s32.totalorder %s17, 3
      %p182 = pnand %p180, %p181
      %p183 = pneg %p182
      // Predicated region
      $region25: #{tpu_custom_call.1} parent=5 // pred_check
        _
      $region26: #{tpu_custom_call.1} parent=5 // pred_check_branch
        %185 = sbr.rel (%p182) target = $region28
      $region27: #{tpu_custom_call.1} parent=5 // pred_region
        %s186 = ssub.s32 %s17, 1
        %s187 = sand.u32 %s48, 1
        %s188 = scalar_lea.sflag [#allocation4], %s187
        %s189 = sand.u32 %s48, 1
        %s190 = smul.addr %s189, 8
        %s191 = scalar_lea.vmem [#allocation3], %s190
        // Predicated region
        $region29: #{tpu_custom_call.1} parent=27 // pred_check
          %p192 = pneg %p61
        $region30: #{tpu_custom_call.1} parent=27 // pred_check_branch
          %194 = sbr.rel (%p192) target = $region32
        $region31: #{tpu_custom_call.1} parent=27 // pred_region
          %195 = dma.done %s188, 128
        $region32: #{tpu_custom_call.1} parent=27 // pred_fallthru
          _
        %s196 = sand.u32 %s80, 1
        %s197 = scalar_lea.sflag [#allocation7], %s196
        %s198 = sand.u32 %s80, 1
        %s199 = smul.addr %s198, 8
        %s200 = scalar_lea.vmem [#allocation6], %s199
        // Predicated region
        $region33: #{tpu_custom_call.1} parent=27 // pred_check
          %p201 = pneg %p93
        $region34: #{tpu_custom_call.1} parent=27 // pred_check_branch
          %203 = sbr.rel (%p201) target = $region36
        $region35: #{tpu_custom_call.1} parent=27 // pred_region
          %204 = dma.done %s197, 128
        $region36: #{tpu_custom_call.1} parent=27 // pred_fallthru
          _
        %s205 = sand.u32 %s48, 1
        %s206 = scalar_lea.sflag [#allocation4], %s205
        %s207 = sand.u32 %s48, 1
        %s208 = smul.addr %s207, 8
        %s209 = scalar_lea.vmem [#allocation3], %s208
        %p210 = pneg %p61
        %p211 = pneg %p58
        %s212 = sand.u32 %s80, 1
        %s213 = scalar_lea.sflag [#allocation7], %s212
        %s214 = sand.u32 %s80, 1
        %s215 = smul.addr %s214, 8
        %s216 = scalar_lea.vmem [#allocation6], %s215
        %p217 = pneg %p93
        %p218 = pneg %p90
        %p219 = pneg %p119
        %p220 = pneg %p116
        %s221 = sand.u32 %s106, 1
        %s222 = scalar_lea.sflag [#allocation5], %s221
        %s223 = sand.u32 %s106, 1
        %s224 = smul.addr %s223, 8
        %s225 = scalar_lea.vmem [#allocation8], %s224
        %s226 = sadd.s32 %s26, %s27
        %p227 = scmp.lt.s32.totalorder %s226, 1
        %s228 = scalar_select %p227, %s226, 1
        %s229 = sadd.s32 %s26, %s27
        %p230 = scmp.lt.s32.totalorder %s229, 1
        %s231 = scalar_select %p230, %s229, 1
        %p232 = scmp.eq.s32.totalorder %s27, 0
        // Predicated region
        $region37: #{tpu_custom_call.1} parent=27 // pred_check
          %p233 = pneg %p232
        $region38: #{tpu_custom_call.1} parent=27 // pred_check_branch
          %235 = sbr.rel (%p233) target = $region40
        $region39: #{tpu_custom_call.1} parent=27 // pred_region
          %236 = vst [vmem:[#allocation2] sm:$0xff] 0.0
        $region40: #{tpu_custom_call.1} parent=27 // pred_fallthru
          _
        %v237 = vld [vmem:[%s191] sm:$0xff]
        %v238 = vld [vmem:[%s200] sm:$0xff]
        %v239 = vsub.f32 %v237, %v238
        %v240 = vmul.f32 %v239, %v239
        %vm241 = vcmp.gt.f32.partialorder %v238, 14.5
        %vm242 = vcmp.lt.f32.partialorder %v238, 4.0
        %v243 = vsel %vm242, 3.0, 1.0
        %v244 = vsel %vm241, 6.0, %v243
        %v245 = vmul.f32 %v244, %v240
        %v246 = vld [vmem:[#allocation2] sm:$0xff]
        %v247 = vadd.f32 %v245, 0.0
        %v248 = vadd.f32 %v246, %v247
        %249 = vst [vmem:[#allocation2] sm:$0xff] %v248
        // Predicated region
        $region41: #{tpu_custom_call.1} parent=27 // pred_check
          %p250 = pneg %p232
        $region42: #{tpu_custom_call.1} parent=27 // pred_check_branch
          %252 = sbr.rel (%p250) target = $region44
        $region43: #{tpu_custom_call.1} parent=27 // pred_region
          %v253 = vld [vmem:[#allocation2] sm:$0xff]
          %254 = vst [vmem:[%s225] sm:$0xff] %v253
        $region44: #{tpu_custom_call.1} parent=27 // pred_fallthru
          _
        %s255 = sand.u32 %s106, 1
        %s256 = scalar_lea.sflag [#allocation5], %s255
        %s257 = sand.u32 %s106, 1
        %s258 = smul.addr %s257, 8
        %s259 = scalar_lea.vmem [#allocation8], %s258
        // Predicated region
        $region45: #{tpu_custom_call.1} parent=27 // pred_check
          %p260 = pneg %p116
        $region46: #{tpu_custom_call.1} parent=27 // pred_check_branch
          %262 = sbr.rel (%p260) target = $region48
        $region47: #{tpu_custom_call.1} parent=27 // pred_region
          %s264 = ssub.s32 128, 128
          %265 = vsyncadd %s256, %s264
          %s266 = smul.addr %s26, 128
          %s267 = scalar_lea.hbm %s2, %s266
          %s269 = sshll.u32 %s259, 4
          %s270 = int_to_ptr.vmem [resolvable:$true] %s269
          %272 = dma.vmem_to_hbm [thread:$0]  %s270, 128, %s267, %s256
        $region48: #{tpu_custom_call.1} parent=27 // pred_fallthru
          _
      $region28: #{tpu_custom_call.1} parent=5 // pred_fallthru
        _
      %p273 = scmp.le.s32.totalorder 2, %s17
      // Predicated region
      $region49: #{tpu_custom_call.1} parent=5 // pred_check
        %p274 = pneg %p273
      $region50: #{tpu_custom_call.1} parent=5 // pred_check_branch
        %276 = sbr.rel (%p274) target = $region52
      $region51: #{tpu_custom_call.1} parent=5 // pred_region
        %s277 = ssub.s32 %s17, 2
        // Predicated region
        $region53: #{tpu_custom_call.1} parent=51 // pred_check
          %p278 = pneg %p122
        $region54: #{tpu_custom_call.1} parent=51 // pred_check_branch
          %280 = sbr.rel (%p278) target = $region56
        $region55: #{tpu_custom_call.1} parent=51 // pred_region
          %s281 = sand.u32 %s107, 1
          %s282 = scalar_lea.sflag [#allocation5], %s281
          %s283 = sand.u32 %s107, 1
          %s284 = smul.addr %s283, 8
          %s285 = scalar_lea.vmem [#allocation8], %s284
          %286 = dma.done %s282, 128
        $region56: #{tpu_custom_call.1} parent=51 // pred_fallthru
          _
      $region52: #{tpu_custom_call.1} parent=5 // pred_fallthru
        _
    $region6: #{tpu_custom_call.1} parent=1 // loop_footer
      %s21 = sadd.s32 1, %s17
    $region7: #{tpu_custom_call.1} parent=1 // loop_footer_branch
      %16 = sbr.rel target = $region3
    $region8: #{tpu_custom_call.1} parent=1 // loop_exit
      _
    %287 = vsyncpa [#allocation4], 1
    %s288 = scalar_lea.sflag [#allocation4], 1
    %289 = vsyncpa %s288, 1
    %290 = vsyncpa [#allocation7], 1
    %s291 = scalar_lea.sflag [#allocation7], 1
    %292 = vsyncpa %s291, 1
    %293 = vsyncpa [#allocation5], 1
    %s294 = scalar_lea.sflag [#allocation5], 1
    %295 = vsyncpa %s294, 1

</llo_original>
